<compile_context>
chip_gen: v7x
topology: tpu7x:2x2x1
jax: 0.10.0
libtpu: 0.0.40
codegen_flags: <defaults>
</compile_context>

<pallas_src>
import math
from functools import partial

import jax
import jax.numpy as jnp
from jax import lax
from jax.experimental import pallas as pl
from jax.experimental.pallas import tpu as pltpu

_COMPUTE_DTYPE = jnp.bfloat16          # MXU operand dtype (accumulation is f32)


def _detect_vmem_limit():
    """Scoped-VMEM limit gated on the actual part: ~half of physical VMEM,
    i.e. 64 MiB on v5e/v6e (128 MiB parts) and 32 MiB on v7x (64 MiB part)."""
    default = 32 * 1024 * 1024
    try:
        info_fn = getattr(pltpu, "get_tpu_info", None)
        if info_fn is None:
            return default
        phys = getattr(info_fn(), "vmem_capacity_bytes", None)
        if not phys:
            return default
        return int(min(96 * 2 ** 20, max(32 * 2 ** 20, int(phys) // 2)))
    except Exception:
        return default


_VMEM_LIMIT_BYTES = _detect_vmem_limit()


def _mosaic_params(grid_ndims=1):
    return pltpu.CompilerParams(
        dimension_semantics=("parallel",) * grid_ndims,
        vmem_limit_bytes=_VMEM_LIMIT_BYTES)


def _round_up(x, m):
    return ((x + m - 1) // m) * m


def _row_tiling(n, max_tile=512):
    """16-sublane-aligned row tile (bf16 packs 16 sublanes/vreg), dividing the
    padded row count exactly; split in half when that keeps the grid >= 2 for
    free (pipelining / dual TensorCore)."""
    n16 = _round_up(max(n, 1), 16)
    tile = 16
    t = min(max_tile, n16)
    t -= t % 16
    while t >= 16:
        if n16 % t == 0:
            tile = t
            break
        t -= 16
    if tile == n16 and n16 >= 32 and (n16 // 2) % 16 == 0:
        tile = n16 // 2
    return tile, n16


def _budget_tile(per_row_bytes, cap=1024):
    budget = _VMEM_LIMIT_BYTES // 2
    t = budget // max(per_row_bytes, 1)
    return max(16, min(cap, (t // 16) * 16))


# ---------------------------------------------------------------------------
# Pallas kernels
# ---------------------------------------------------------------------------
def _linear2_kernel(x_ref, w1_ref, b1_ref, w2_ref, b2_ref, o_ref, *, relu1, relu2):
    cdt = w2_ref.dtype
    h = jnp.dot(x_ref[...], w1_ref[...],
                preferred_element_type=jnp.float32) + b1_ref[...]
    if relu1:
        h = jnp.maximum(h, 0.0)
    y = jnp.dot(h.astype(cdt), w2_ref[...],
                preferred_element_type=jnp.float32) + b2_ref[...]
    if relu2:
        y = jnp.maximum(y, 0.0)
    o_ref[...] = y.astype(o_ref.dtype)


def _pt_attention_kernel(qx_ref, kx_ref, v_ref, pre_ref,
                         wd1_ref, bd1_ref, wd2_ref, bd2_ref,
                         wg1_ref, bg1_ref, wg2_ref, bg2_ref,
                         w2_ref, b2_ref, o_ref):
    """Fully fused Point-Transformer vector attention for one (batch, row-tile)
    block:
        pos    = MLP_delta(center_xyz - neighbor_xyz)
        logits = MLP_gamma(q - k + pos)            (softmax scale pre-folded)
        attn   = softmax over neighbors
        out    = fc2( sum_k attn * (v + pos) ) + bias + residual
    center/neighbor xyz ride in lanes [dm:dm+3] of the q / k slabs."""
    _, kk, tile, dm = v_ref.shape
    rows = kk * tile
    cdt = wd2_ref.dtype

    qx = qx_ref[0].astype(jnp.float32)               # (tile, dm+3)
    kx = kx_ref[0].astype(jnp.float32)               # (kk, tile, dm+3)
    q = qx[:, :dm]                                   # (tile, dm)
    rel = qx[:, dm:][None, :, :] - kx[..., dm:]      # (kk, tile, 3)
    kf = kx[..., :dm]                                # (kk, tile, dm)

    # delta-MLP layer 1 on the VPU: a 3-deep contraction would waste a full
    # MXU pass at 3/256 utilization.
    wd1 = wd1_ref[...]                               # (3, dm) f32
    pos = (rel[..., 0:1] * wd1[0:1].reshape(1, 1, dm)
           + rel[..., 1:2] * wd1[1:2].reshape(1, 1, dm)
           + rel[..., 2:3] * wd1[2:3].reshape(1, 1, dm)
           + bd1_ref[...].reshape(1, 1, dm))
    pos = jnp.maximum(pos, 0.0)
    pos = jnp.dot(pos.reshape(rows, dm).astype(cdt), wd2_ref[...],
                  preferred_element_type=jnp.float32) + bd2_ref[...]
    pos = pos.reshape(kk, tile, dm)

    # gamma MLP on (q - k + pos)
    g = q[None, :, :] - kf + pos
    g2 = jnp.dot(g.reshape(rows, dm).astype(cdt), wg1_ref[...],
                 preferred_element_type=jnp.float32) + bg1_ref[...]
    g2 = jnp.maximum(g2, 0.0)
    logits = (jnp.dot(g2.astype(cdt), wg2_ref[...],
                      preferred_element_type=jnp.float32) + bg2_ref[...]
              ).reshape(kk, tile, dm)

    # softmax over the neighbor axis + weighted sum (f32 elementwise)
    m = jnp.max(logits, axis=0, keepdims=True)
    e = jnp.exp(logits - m)
    attn = e * pl.reciprocal(jnp.sum(e, axis=0, keepdims=True), approx=True)
    res = jnp.sum(attn * (v_ref[0].astype(jnp.float32) + pos), axis=0)  # (tile, dm)

    # fused fc2 + residual epilogue
    y = (jnp.dot(res.astype(cdt), w2_ref[...],
                 preferred_element_type=jnp.float32)
         + b2_ref[...] + pre_ref[0].astype(jnp.float32))
    o_ref[0] = y.astype(o_ref.dtype)


def _sa_mlp_maxpool_kernel(f_ref, w1_ref, b1_ref, w2_ref, b2_ref, o_ref):
    """Fused set-abstraction MLP (2 x 1x1-conv + ReLU) + max over neighbors."""
    _, kk, tile, cin = f_ref.shape
    rows = kk * tile
    cdt = w1_ref.dtype
    cout = w2_ref.shape[-1]
    x = f_ref[0].reshape(rows, cin)
    h = jnp.dot(x, w1_ref[...], preferred_element_type=jnp.float32) + b1_ref[...]
    h = jnp.maximum(h, 0.0)
    h = jnp.dot(h.astype(cdt), w2_ref[...],
                preferred_element_type=jnp.float32) + b2_ref[...]
    h = jnp.maximum(h, 0.0)
    o_ref[0] = jnp.max(h.reshape(kk, tile, cout), axis=0).astype(o_ref.dtype)


# ---------------------------------------------------------------------------
# Pallas wrappers
# ---------------------------------------------------------------------------
def pallas_linear2(x, w1, b1, w2, b2, *, relu1=False, relu2=False,
                   out_dtype=jnp.float32):
    """y = act2(act1(x @ w1 + b1) @ w2 + b2) fused in one kernel."""
    cin, mid = w1.shape
    cout = w2.shape[1]
    lead = x.shape[:-1]
    x2 = x.reshape(-1, cin).astype(_COMPUTE_DTYPE)
    n = x2.shape[0]
    per_row = (_round_up(cin, 128) * 2 * 2          # bf16 input, double-buffered
               + _round_up(mid, 128) * 4 * 2        # f32 hidden temporaries
               + _round_up(cout, 128) * 4 * 2)      # output (double-buffered)
    tile, n_pad = _row_tiling(n, max_tile=_budget_tile(per_row))
    if n_pad != n:
        x2 = jnp.pad(x2, ((0, n_pad - n), (0, 0)))
    b1v = (jnp.zeros((1, mid), jnp.float32) if b1 is None
           else b1.reshape(1, mid).astype(jnp.float32))
    b2v = (jnp.zeros((1, cout), jnp.float32) if b2 is None
           else b2.reshape(1, cout).astype(jnp.float32))
    out = pl.pallas_call(
        partial(_linear2_kernel, relu1=relu1, relu2=relu2),
        out_shape=jax.ShapeDtypeStruct((n_pad, cout), out_dtype),
        grid=(n_pad // tile,),
        in_specs=[
            pl.BlockSpec((tile, cin), lambda i: (i, 0)),
            pl.BlockSpec((cin, mid), lambda i: (0, 0)),
            pl.BlockSpec((1, mid), lambda i: (0, 0)),
            pl.BlockSpec((mid, cout), lambda i: (0, 0)),
            pl.BlockSpec((1, cout), lambda i: (0, 0)),
        ],
        out_specs=pl.BlockSpec((tile, cout), lambda i: (i, 0)),
        compiler_params=_mosaic_params(1),
    )(x2, w1.astype(_COMPUTE_DTYPE), b1v, w2.astype(_COMPUTE_DTYPE), b2v)
    if n_pad != n:
        out = out[:n]
    return out.reshape(lead + (cout,))


def pallas_pt_attention(qx, kxg, vg, pre,
                        wd1, bd1, wd2, bd2, wg1, bg1, wg2, bg2, w2, b2,
                        out_dtype=jnp.float32):
    """qx:[B,N,dm+3]  kxg/vg:[B,K,N,dm+3]/[B,K,N,dm]  pre:[B,N,dout]
       -> fc2(attention(...)) + pre : [B,N,dout]."""
    B, N, dmp3 = qx.shape
    K = kxg.shape[1]
    dm = vg.shape[-1]
    d_out = w2.shape[1]
    cdt = _COMPUTE_DTYPE

    # Per-row VMEM: double-buffered bf16 K-expanded inputs (lane-padded) plus
    # ~8 live f32 [K,tile,dm] temporaries (pos, g, logits, e, attn, v+pos and
    # reshape copies) plus the small per-row slabs.
    per_row = (K * (_round_up(dmp3, 128) + _round_up(dm, 128)) * 2 * 2
               + 8 * K * dm * 4
               + 4 * (_round_up(dmp3, 128) + _round_up(d_out, 128)) * 4)
    tile, n_pad = _row_tiling(N, max_tile=_budget_tile(per_row))

    def pad_axis(a, axis):
        if n_pad == N:
            return a
        pw = [(0, 0)] * a.ndim
        pw[axis] = (0, n_pad - N)
        return jnp.pad(a, pw)

    qxp = pad_axis(qx, 1)
    kxp = pad_axis(kxg, 2)
    vp = pad_axis(vg, 2)
    prep = pad_axis(pre, 1)

    def b_(v, d):
        return (jnp.zeros((1, d), jnp.float32) if v is None
                else v.reshape(1, d).astype(jnp.float32))

    ws = lambda shp: pl.BlockSpec(shp, lambda b, i: (0, 0))
    out = pl.pallas_call(
        _pt_attention_kernel,
        out_shape=jax.ShapeDtypeStruct((B, n_pad, d_out), out_dtype),
        grid=(B, n_pad // tile),
        in_specs=[
            pl.BlockSpec((1, tile, dmp3), lambda b, i: (b, i, 0)),
            pl.BlockSpec((1, K, tile, dmp3), lambda b, i: (b, 0, i, 0)),
            pl.BlockSpec((1, K, tile, dm), lambda b, i: (b, 0, i, 0)),
            pl.BlockSpec((1, tile, d_out), lambda b, i: (b, i, 0)),
            ws((3, dm)), ws((1, dm)),
            ws((dm, dm)), ws((1, dm)),
            ws((dm, dm)), ws((1, dm)),
            ws((dm, dm)), ws((1, dm)),
            ws((dm, d_out)), ws((1, d_out)),
        ],
        out_specs=pl.BlockSpec((1, tile, d_out), lambda b, i: (b, i, 0)),
        compiler_params=_mosaic_params(2),
    )(qxp, kxp, vp, prep,
      wd1.astype(jnp.float32), b_(bd1, dm), wd2.astype(cdt), b_(bd2, dm),
      wg1.astype(cdt), b_(bg1, dm), wg2.astype(cdt), b_(bg2, dm),
      w2.astype(cdt), b_(b2, d_out))
    if n_pad != N:
        out = out[:, :N]
    return out


def pallas_sa_mlp_maxpool(feats, w1, b1, w2, b2, out_dtype=_COMPUTE_DTYPE):
    """feats:[B,K,S,Cin] (bf16) -> [B,S,Cout]; fused 2-layer MLP + max over K."""
    B, K, S, cin = feats.shape
    mid = w1.shape[1]
    cout = w2.shape[1]
    per_row = (K * _round_up(cin, 128) * 2 * 2
               + 3 * K * max(mid, cout) * 4
               + 2 * _round_up(cout, 128) * 2)
    tile, s_pad = _row_tiling(S, max_tile=_budget_tile(per_row))
    if s_pad != S:
        feats = jnp.pad(feats, ((0, 0), (0, 0), (0, s_pad - S), (0, 0)))
    cdt = _COMPUTE_DTYPE
    out = pl.pallas_call(
        _sa_mlp_maxpool_kernel,
        out_shape=jax.ShapeDtypeStruct((B, s_pad, cout), out_dtype),
        grid=(B, s_pad // tile),
        in_specs=[
            pl.BlockSpec((1, K, tile, cin), lambda b, i: (b, 0, i, 0)),
            pl.BlockSpec((cin, mid), lambda b, i: (0, 0)),
            pl.BlockSpec((1, mid), lambda b, i: (0, 0)),
            pl.BlockSpec((mid, cout), lambda b, i: (0, 0)),
            pl.BlockSpec((1, cout), lambda b, i: (0, 0)),
        ],
        out_specs=pl.BlockSpec((1, tile, cout), lambda b, i: (b, i, 0)),
        compiler_params=_mosaic_params(2),
    )(feats.astype(cdt), w1.astype(cdt), b1.reshape(1, -1).astype(jnp.float32),
      w2.astype(cdt), b2.reshape(1, -1).astype(jnp.float32))
    if s_pad != S:
        out = out[:, :S]
    return out


# ---------------------------------------------------------------------------
# Plain-JAX glue: gather / kNN / FPS / pairwise distances
# ---------------------------------------------------------------------------
def square_distance(src, dst):
    d = -2.0 * jnp.einsum("bnc,bmc->bnm", src, dst)
    d = d + jnp.sum(src ** 2, -1)[:, :, None] + jnp.sum(dst ** 2, -1)[:, None, :]
    return d


def index_points(points, idx):
    # points [B, N, C], idx [B, ...] -> [B, ..., C]
    b = points.shape[0]
    batch = jnp.arange(b).reshape((b,) + (1,) * (idx.ndim - 1))
    return points[batch, idx]


def farthest_point_sample(xyz, npoint):
    # TODO(synk): deterministic start at index 0 (PyTorch impl uses a random start).
    b, n, _ = xyz.shape

    def body(i, state):
        centroids, distance, farthest = state
        centroids = centroids.at[:, i].set(farthest)
        centroid = xyz[jnp.arange(b), farthest][:, None, :]
        dist = jnp.sum((xyz - centroid) ** 2, -1)
        distance = jnp.minimum(distance, dist)
        farthest = jnp.argmax(distance, -1).astype(jnp.int32)
        return centroids, distance, farthest

    init = (jnp.zeros((b, npoint), jnp.int32),
            jnp.full((b, n), 1e10, jnp.float32),
            jnp.zeros((b,), jnp.int32))
    centroids, _, _ = lax.fori_loop(0, npoint, body, init)
    return centroids


# ---------------------------------------------------------------------------
# Parameter init (deterministic, PyTorch-Linear-like uniform bounds)
# ---------------------------------------------------------------------------
def init_linear(key, cin, cout, bias=True):
    kw, kb = jax.random.split(key)
    bound = 1.0 / math.sqrt(cin)
    w = jax.random.uniform(kw, (cin, cout), jnp.float32, -bound, bound)
    b = jax.random.uniform(kb, (cout,), jnp.float32, -bound, bound) if bias else None
    return w, b


def init_transformer_block(key, d_points, d_model):
    ks = jax.random.split(key, 9)
    wq, _ = init_linear(ks[2], d_model, d_model, bias=False)
    wk, _ = init_linear(ks[3], d_model, d_model, bias=False)
    wv, _ = init_linear(ks[4], d_model, d_model, bias=False)
    # fused q|k|v projection, zero-padded to a multiple of 128 output lanes so
    # the qkv store is lane-dense (unmasked vst).
    qkv_cols = _round_up(3 * d_model, 128)
    w_qkv = jnp.concatenate(
        [wq, wk, wv, jnp.zeros((d_model, qkv_cols - 3 * d_model), jnp.float32)],
        axis=1)
    wg2, bg2 = init_linear(ks[8], d_model, d_model)
    scale = 1.0 / math.sqrt(d_model)   # softmax scale folded into fc_gamma2
    return {
        "fc1": init_linear(ks[0], d_points, d_model),
        "fc2": init_linear(ks[1], d_model, d_points),
        "w_qkv": (w_qkv, None),
        "fc_delta1": init_linear(ks[5], 3, d_model),
        "fc_delta2": init_linear(ks[6], d_model, d_model),
        "fc_gamma1": init_linear(ks[7], d_model, d_model),
        "fc_gamma2": (wg2 * scale, bg2 * scale),
    }


def init_set_abstraction(key, in_channel, mlp):
    # Conv2d(1x1) + BatchNorm2d (eval mode, default init) folded into weights:
    # default BN => y = x / sqrt(1 + eps).
    eps = 1e-5
    scale = 1.0 / math.sqrt(1.0 + eps)
    layers = []
    cin = in_channel + 3  # concat of relative xyz with grouped features
    for k_, cout in zip(jax.random.split(key, len(mlp)), mlp):
        w, b = init_linear(k_, cin, cout)
        layers.append((w * scale, b * scale))
        cin = cout
    return {"mlp": layers}


def init_backbone(key, cfg):
    keys = jax.random.split(key, 2 + 2 * cfg.nblocks)
    k1a, k1b = jax.random.split(keys[0])
    p = {
        "fc1": [init_linear(k1a, cfg.input_dim, 32), init_linear(k1b, 32, 32)],
        "transformer1": init_transformer_block(keys[1], 32, cfg.transformer_dim),
        "td": [],
        "tf": [],
    }
    for i in range(cfg.nblocks):
        channel = 32 * 2 ** (i + 1)
        p["td"].append(init_set_abstraction(keys[2 + 2 * i], channel // 2, [channel, channel]))
        p["tf"].append(init_transformer_block(keys[3 + 2 * i], channel, cfg.transformer_dim))
    return p


# ---------------------------------------------------------------------------
# Modules
# ---------------------------------------------------------------------------
def transformer_block(p, xyz, normals, feats, k):
    # TODO(synk): exact TransformerBlock variant (use of normals / pos_enc flag /
    # npoints) was not provided; this implements the standard Point-Transformer
    # vector attention with relative-xyz positional encoding.
    d_model = p["fc1"][0].shape[1]
    B, N, _ = xyz.shape
    k = min(k, N)

    dists = square_distance(xyz, xyz)
    _, knn_idx = lax.top_k(-dists, k)                       # [B, N, k]
    knn_idx_t = jnp.transpose(knn_idx, (0, 2, 1))           # [B, k, N] (K-major)

    pre = feats
    # fused: fc1 (d_points->d_model) followed by the combined q|k|v projection
    qkv = pallas_linear2(feats, p["fc1"][0], p["fc1"][1],
                         p["w_qkv"][0], None,
                         out_dtype=_COMPUTE_DTYPE)           # [B, N, 256] bf16
    xyz_c = xyz.astype(_COMPUTE_DTYPE)
    # pack center/neighbor xyz into spare lanes of the q / k slabs (dm+3 <= 128)
    qx = jnp.concatenate([qkv[..., :d_model], xyz_c], axis=-1)            # [B,N,dm+3]
    kx = jnp.concatenate([qkv[..., d_model:2 * d_model], xyz_c], axis=-1)  # [B,N,dm+3]
    v = qkv[..., 2 * d_model:3 * d_model]                                  # [B,N,dm]
    # TODO(synk): neighbor gather kept in XLA; an in-kernel scalar-prefetch
    # gather (PrefetchScalarGridSpec + make_async_copy) would remove this
    # K-expanded HBM round trip.
    kxg = index_points(kx, knn_idx_t)                        # [B, k, N, dm+3] bf16
    vg = index_points(v, knn_idx_t)                          # [B, k, N, dm]   bf16

    out = pallas_pt_attention(
        qx, kxg, vg, pre,
        p["fc_delta1"][0], p["fc_delta1"][1],
        p["fc_delta2"][0], p["fc_delta2"][1],
        p["fc_gamma1"][0], p["fc_gamma1"][1],
        p["fc_gamma2"][0], p["fc_gamma2"][1],
        p["fc2"][0], p["fc2"][1])                            # fc2 + residual fused
    return out, None


def set_abstraction(p, xyz, normals, points, npoint, nsample, fps_index=None):
    # PointNetSetAbstraction(group_all=False, knn=True) semantics.
    B, N, _ = xyz.shape
    nsample = min(nsample, N)
    fps_idx = farthest_point_sample(xyz, npoint) if fps_index is None else fps_index
    new_xyz = index_points(xyz, fps_idx)                     # [B, S, 3]
    new_normals = index_points(normals, fps_idx)

    dists = square_distance(new_xyz, xyz)                    # [B, S, N]
    _, knn_idx = lax.top_k(-dists, nsample)                  # [B, S, K]
    knn_idx_t = jnp.transpose(knn_idx, (0, 2, 1))            # [B, K, S]
    grouped_xyz = (index_points(xyz, knn_idx_t)
                   - new_xyz[:, None, :, :]).astype(_COMPUTE_DTYPE)   # [B,K,S,3]
    grouped_pts = index_points(points.astype(_COMPUTE_DTYPE), knn_idx_t)  # [B,K,S,C]
    feats = jnp.concatenate([grouped_xyz, grouped_pts], axis=-1)          # bf16

    (w1, b1), (w2, b2) = p["mlp"]
    # bf16 output: its only consumer (next transformer block) casts to bf16.
    new_points = pallas_sa_mlp_maxpool(feats, w1, b1, w2, b2)   # [B, S, C_out]
    return new_xyz, new_normals, new_points, fps_idx


def backbone_forward(p, cfg, xyz, normals, init_features):
    (w1, b1), (w2, b2) = p["fc1"]
    x = pallas_linear2(init_features, w1, b1, w2, b2, relu1=True)   # Lin+ReLU+Lin fused
    points, _ = transformer_block(p["transformer1"], xyz, normals, x, cfg.nneighbor_bias)

    xyz_normals_feats = [(xyz, normals, points)]
    fps_indices = []
    npoints = cfg.num_point
    for i in range(cfg.nblocks):
        npoints = npoints // 4
        xyz, normals, points, fps_idx = set_abstraction(
            p["td"][i], xyz, normals, points, npoints, cfg.nneighbor)
        points, _ = transformer_block(p["tf"][i], xyz, normals, points, cfg.nneighbor_bias)
        xyz_normals_feats.append((xyz, normals, points))
        fps_indices.append(fps_idx)
    return points, xyz_normals_feats, fps_indices


# ---------------------------------------------------------------------------
# Main
# ---------------------------------------------------------------------------
class Cfg:
    num_point = 16
    nblocks = 1
    nneighbor = 4
    nneighbor_bias = 4
    input_dim = 6
    transformer_dim = 64
    pos_enc = "relative_xyz"


if __name__ == "__main__":
    cfg = Cfg()
    key = jax.random.PRNGKey(0)
    kx, kn, kf, kp = jax.random.split(key, 4)

    B = 2
    xyz = jax.random.normal(kx, (B, cfg.num_point, 3), jnp.float32)
    normals = jax.random.normal(kn, (B, cfg.num_point, 3), jnp.float32)
    normals = normals / (jnp.linalg.norm(normals, axis=-1, keepdims=True) + 1e-8)
    init_features = jax.random.normal(kf, (B, cfg.num_point, cfg.input_dim), jnp.float32)

    params = init_backbone(kp, cfg)
    points, xyz_normals_feats, fps_indices = backbone_forward(
        params, cfg, xyz, normals, init_features)

    jax.block_until_ready(points)
    for (a, b, c) in xyz_normals_feats:
        jax.block_until_ready(c)
    for idx in fps_indices:
        jax.block_until_ready(idx)

    # Sanity: final features are [B, num_point // 4**nblocks, 32 * 2**nblocks]
    assert points.shape == (B, cfg.num_point // 4 ** cfg.nblocks, 32 * 2 ** cfg.nblocks)
    assert bool(jnp.all(jnp.isfinite(points)))
    print("KERNEL_OK")
</pallas_src>

<mosaic_0001>
module attributes {stable_mosaic.version = 11 : i64} {
  func.func @_linear2_kernel(%arg0: i32, %arg1: memref<16x6xbf16, #tpu.memory_space<vmem>>, %arg2: memref<6x32xbf16, #tpu.memory_space<vmem>>, %arg3: memref<1x32xf32, #tpu.memory_space<vmem>>, %arg4: memref<32x32xbf16, #tpu.memory_space<vmem>>, %arg5: memref<1x32xf32, #tpu.memory_space<vmem>>, %arg6: memref<16x32xf32, #tpu.memory_space<vmem>>) attributes {dimension_semantics = [#tpu.dimension_semantics<parallel>], iteration_bounds = array<i64: 2>, scalar_prefetch = 0 : i64, scratch_operands = 0 : i64, tpu.core_type = #tpu.core_type<tc>, window_params = [{transform_indices = @transform_0, window_bounds = array<i64: 16, 6>}, {pipeline_mode = #tpu.pipeline_mode<synchronous>, transform_indices = @transform_1, window_bounds = array<i64: 6, 32>}, {pipeline_mode = #tpu.pipeline_mode<synchronous>, transform_indices = @transform_2, window_bounds = array<i64: 1, 32>}, {pipeline_mode = #tpu.pipeline_mode<synchronous>, transform_indices = @transform_3, window_bounds = array<i64: 32, 32>}, {pipeline_mode = #tpu.pipeline_mode<synchronous>, transform_indices = @transform_4, window_bounds = array<i64: 1, 32>}, {transform_indices = @transform_5, window_bounds = array<i64: 16, 32>}]} {
    %c0 = arith.constant 0 : index
    %c0_0 = arith.constant 0 : index
    %0 = vector.load %arg1[%c0, %c0_0] : memref<16x6xbf16, #tpu.memory_space<vmem>>, vector<16x6xbf16>
    %c0_1 = arith.constant 0 : index
    %c0_2 = arith.constant 0 : index
    %1 = vector.load %arg2[%c0_1, %c0_2] : memref<6x32xbf16, #tpu.memory_space<vmem>>, vector<6x32xbf16>
    %cst = arith.constant dense<0.000000e+00> : vector<16x32xf32>
    %2 = tpu.matmul %0, %1, %cst {dimension_numbers = #tpu.dot_dimension_numbers<[1], [0], [0], [1], [0, 0, 1, 1], [], []>} : vector<16x6xbf16>, vector<6x32xbf16>, vector<16x32xf32> -> vector<16x32xf32>
    %c0_3 = arith.constant 0 : index
    %c0_4 = arith.constant 0 : index
    %3 = vector.load %arg3[%c0_3, %c0_4] : memref<1x32xf32, #tpu.memory_space<vmem>>, vector<1x32xf32>
    %4 = vector.broadcast %3 : vector<1x32xf32> to vector<16x32xf32>
    %5 = arith.addf %2, %4 : vector<16x32xf32>
    %cst_5 = arith.constant 0.000000e+00 : f32
    %6 = vector.broadcast %cst_5 : f32 to vector<16x32xf32>
    %7 = arith.maximumf %5, %6 : vector<16x32xf32>
    %8 = arith.truncf %7 : vector<16x32xf32> to vector<16x32xbf16>
    %c0_6 = arith.constant 0 : index
    %c0_7 = arith.constant 0 : index
    %9 = vector.load %arg4[%c0_6, %c0_7] : memref<32x32xbf16, #tpu.memory_space<vmem>>, vector<32x32xbf16>
    %cst_8 = arith.constant dense<0.000000e+00> : vector<16x32xf32>
    %10 = tpu.matmul %8, %9, %cst_8 {dimension_numbers = #tpu.dot_dimension_numbers<[1], [0], [0], [1], [0, 0, 1, 1], [], []>} : vector<16x32xbf16>, vector<32x32xbf16>, vector<16x32xf32> -> vector<16x32xf32>
    %c0_9 = arith.constant 0 : index
    %c0_10 = arith.constant 0 : index
    %11 = vector.load %arg5[%c0_9, %c0_10] : memref<1x32xf32, #tpu.memory_space<vmem>>, vector<1x32xf32>
    %12 = vector.broadcast %11 : vector<1x32xf32> to vector<16x32xf32>
    %13 = arith.addf %10, %12 : vector<16x32xf32>
    %c0_11 = arith.constant 0 : index
    %c0_12 = arith.constant 0 : index
    %14 = vector.load %arg6[%c0_11, %c0_12] : memref<16x32xf32, #tpu.memory_space<vmem>>, vector<16x32xf32>
    tpu.vector_store %arg6[%c0_11, %c0_12], %13 {strides = array<i32>} : memref<16x32xf32, #tpu.memory_space<vmem>>, vector<16x32xf32>,
    return
  }
  func.func @transform_0(%arg0: i32) -> (i32, i32) {
    %c0_i32 = arith.constant 0 : i32
    %c0_i32_0 = arith.constant 0 : i32
    return %arg0, %c0_i32 : i32, i32
  }
  func.func @transform_1(%arg0: i32) -> (i32, i32) {
    %c0_i32 = arith.constant 0 : i32
    %c0_i32_0 = arith.constant 0 : i32
    %c0_i32_1 = arith.constant 0 : i32
    return %c0_i32, %c0_i32_0 : i32, i32
  }
  func.func @transform_2(%arg0: i32) -> (i32, i32) {
    %c0_i32 = arith.constant 0 : i32
    %c0_i32_0 = arith.constant 0 : i32
    %c0_i32_1 = arith.constant 0 : i32
    return %c0_i32, %c0_i32_0 : i32, i32
  }
  func.func @transform_3(%arg0: i32) -> (i32, i32) {
    %c0_i32 = arith.constant 0 : i32
    %c0_i32_0 = arith.constant 0 : i32
    %c0_i32_1 = arith.constant 0 : i32
    return %c0_i32, %c0_i32_0 : i32, i32
  }
  func.func @transform_4(%arg0: i32) -> (i32, i32) {
    %c0_i32 = arith.constant 0 : i32
    %c0_i32_0 = arith.constant 0 : i32
    %c0_i32_1 = arith.constant 0 : i32
    return %c0_i32, %c0_i32_0 : i32, i32
  }
  func.func @transform_5(%arg0: i32) -> (i32, i32) {
    %c0_i32 = arith.constant 0 : i32
    %c0_i32_0 = arith.constant 0 : i32
    return %arg0, %c0_i32 : i32, i32
  }
}

</mosaic_0001>

<llo_original>
// kernel: tpu_custom_call.1
$region0: #{tpu_custom_call.1}
  #allocation0 [shape = 'u32[]', space=smem, size = 0x4, offset = 0x4, fixed_abs, tag = 'smem constant byte address 0x4 - core index']
  #allocation1 [shape = 'u32[144,128]{1,0:T(1,128)}', space=vmem, size = 0x12000, scoped, tag = 'internal scratch']
  %s0 = inlined_call_operand.vmem [shape: bf16[32,6], index: 0, kind: input, shape index: {}]
  %s1 = inlined_call_operand.vmem [shape: bf16[6,32], index: 1, kind: input, shape index: {}]
  %s2 = inlined_call_operand.vmem [shape: f32[1,32], index: 2, kind: input, shape index: {}]
  %s3 = inlined_call_operand.vmem [shape: bf16[32,32], index: 3, kind: input, shape index: {}]
  %s4 = inlined_call_operand.vmem [shape: f32[1,32], index: 4, kind: input, shape index: {}]
  %s5 = inlined_call_operand.hbm [shape: f32[32,32], index: 5, kind: output, shape index: {}]
  %s6 = sld [smem:[#allocation0]]
  $region53: #{tpu_custom_call.1} parent=0
    _
  %s8 = ssub.s32 1, %s6
  %s9 = scalar_select 0, %s8, %s6
  $region1: #{tpu_custom_call.1} parent=0
    #allocation2 [shape = 'u8[16384]{0}', space=vmem, size = 0x4000, scoped, tag = 'output window, operand 0']
    #allocation3 [shape = 's32[2]{0}', space=sflag, size = 0x8, scoped, tag = 'scoped memory for tpu_custom_call.1']
    %10 = vsyncpa [#allocation3], 0
    %s11 = scalar_lea.sflag [#allocation3], 1
    %12 = vsyncpa %s11, 0
    loop: start=0, step=1, limit=4
    $region2: #{tpu_custom_call.1} parent=1 // loop_pre_header
      _
    $region3: #{tpu_custom_call.1} parent=1 // loop_header
      %s14 = sphi 0, %s18
      %p15 = scmp.ge.s32.totalorder %s14, 4
      %s24 = sphi 0, %s26
      %s27 = sphi 0, %s24
      %s28 = sphi 0, %s27
      %s44 = sphi 0, %s28
      %s48 = sphi 0, %s48
      %s50 = sphi 0, %s48
      %s51 = sphi 0, %s50
      %s65 = sphi 0, %s51
      %s69 = sphi 0, %s69
      %s71 = sphi 0, %s69
      %s72 = sphi 0, %s71
      %s86 = sphi 0, %s72
      %s90 = sphi 0, %s90
      %s92 = sphi 0, %s90
      %s93 = sphi 0, %s92
      %s107 = sphi 0, %s93
      %s111 = sphi 0, %s111
      %s113 = sphi 0, %s111
      %s114 = sphi 0, %s113
      %s128 = sphi 0, %s114
      %s134 = sphi 0, %s136
      %s137 = sphi 0, %s134
      %s138 = sphi 0, %s137
      %s154 = sphi 0, %s138
    $region4: #{tpu_custom_call.1} parent=1 // loop_header_branch
      %17 = sbr.rel (%p15) target = $region8
    $region5: #{tpu_custom_call.1} parent=1 // loop_body
      %s19 = ssub.s32 %s14, 1
      %s20 = ssub.s32 %s14, 2
      %s21 = sadd.s32 %s14, 1
      %s22 = ssub.s32 %s14, %s21
      %p23 = scmp.eq.s32.totalorder %s22, 0
      %s25 = sadd.s32 %s24, 1
      %s26 = scalar_select %p23, %s24, %s25
      %p29 = pneg %p23
      %p30 = scmp.eq.s32.totalorder %s14, 1
      %p31 = por %p29, %p30
      %p32 = scmp.ne.s32.totalorder %s24, %s27
      %p33 = scmp.eq.s32.totalorder %s14, 0
      %p34 = por %p32, %p33
      %p35 = scmp.ne.s32.totalorder %s24, %s27
      %p36 = scmp.eq.s32.totalorder %s19, 1
      %p37 = por %p35, %p36
      %p38 = scmp.ne.s32.totalorder %s27, %s28
      %p39 = scmp.eq.s32.totalorder %s19, 0
      %p40 = por %p38, %p39
      %p41 = scmp.ne.s32.totalorder %s27, %s28
      %p42 = scmp.eq.s32.totalorder %s20, 1
      %p43 = por %p41, %p42
      %p45 = scmp.ne.s32.totalorder %s28, %s44
      %p46 = scmp.eq.s32.totalorder %s20, 0
      %p47 = por %p45, %p46
      %s49 = sadd.s32 %s48, 1
      %p52 = scmp.eq.s32.totalorder %s14, 1
      %p53 = scmp.ne.s32.totalorder %s48, %s50
      %p54 = scmp.eq.s32.totalorder %s14, 0
      %p55 = por %p53, %p54
      %p56 = scmp.ne.s32.totalorder %s48, %s50
      %p57 = scmp.eq.s32.totalorder %s19, 1
      %p58 = por %p56, %p57
      %p59 = scmp.ne.s32.totalorder %s50, %s51
      %p60 = scmp.eq.s32.totalorder %s19, 0
      %p61 = por %p59, %p60
      %p62 = scmp.ne.s32.totalorder %s50, %s51
      %p63 = scmp.eq.s32.totalorder %s20, 1
      %p64 = por %p62, %p63
      %p66 = scmp.ne.s32.totalorder %s51, %s65
      %p67 = scmp.eq.s32.totalorder %s20, 0
      %p68 = por %p66, %p67
      %s70 = sadd.s32 %s69, 1
      %p73 = scmp.eq.s32.totalorder %s14, 1
      %p74 = scmp.ne.s32.totalorder %s69, %s71
      %p75 = scmp.eq.s32.totalorder %s14, 0
      %p76 = por %p74, %p75
      %p77 = scmp.ne.s32.totalorder %s69, %s71
      %p78 = scmp.eq.s32.totalorder %s19, 1
      %p79 = por %p77, %p78
      %p80 = scmp.ne.s32.totalorder %s71, %s72
      %p81 = scmp.eq.s32.totalorder %s19, 0
      %p82 = por %p80, %p81
      %p83 = scmp.ne.s32.totalorder %s71, %s72
      %p84 = scmp.eq.s32.totalorder %s20, 1
      %p85 = por %p83, %p84
      %p87 = scmp.ne.s32.totalorder %s72, %s86
      %p88 = scmp.eq.s32.totalorder %s20, 0
      %p89 = por %p87, %p88
      %s91 = sadd.s32 %s90, 1
      %p94 = scmp.eq.s32.totalorder %s14, 1
      %p95 = scmp.ne.s32.totalorder %s90, %s92
      %p96 = scmp.eq.s32.totalorder %s14, 0
      %p97 = por %p95, %p96
      %p98 = scmp.ne.s32.totalorder %s90, %s92
      %p99 = scmp.eq.s32.totalorder %s19, 1
      %p100 = por %p98, %p99
      %p101 = scmp.ne.s32.totalorder %s92, %s93
      %p102 = scmp.eq.s32.totalorder %s19, 0
      %p103 = por %p101, %p102
      %p104 = scmp.ne.s32.totalorder %s92, %s93
      %p105 = scmp.eq.s32.totalorder %s20, 1
      %p106 = por %p104, %p105
      %p108 = scmp.ne.s32.totalorder %s93, %s107
      %p109 = scmp.eq.s32.totalorder %s20, 0
      %p110 = por %p108, %p109
      %s112 = sadd.s32 %s111, 1
      %p115 = scmp.eq.s32.totalorder %s14, 1
      %p116 = scmp.ne.s32.totalorder %s111, %s113
      %p117 = scmp.eq.s32.totalorder %s14, 0
      %p118 = por %p116, %p117
      %p119 = scmp.ne.s32.totalorder %s111, %s113
      %p120 = scmp.eq.s32.totalorder %s19, 1
      %p121 = por %p119, %p120
      %p122 = scmp.ne.s32.totalorder %s113, %s114
      %p123 = scmp.eq.s32.totalorder %s19, 0
      %p124 = por %p122, %p123
      %p125 = scmp.ne.s32.totalorder %s113, %s114
      %p126 = scmp.eq.s32.totalorder %s20, 1
      %p127 = por %p125, %p126
      %p129 = scmp.ne.s32.totalorder %s114, %s128
      %p130 = scmp.eq.s32.totalorder %s20, 0
      %p131 = por %p129, %p130
      %s132 = ssub.s32 %s14, %s21
      %p133 = scmp.eq.s32.totalorder %s132, 0
      %s135 = sadd.s32 %s134, 1
      %s136 = scalar_select %p133, %s134, %s135
      %p139 = pneg %p133
      %p140 = scmp.eq.s32.totalorder %s14, 1
      %p141 = por %p139, %p140
      %p142 = scmp.ne.s32.totalorder %s134, %s137
      %p143 = scmp.eq.s32.totalorder %s14, 0
      %p144 = por %p142, %p143
      %p145 = scmp.ne.s32.totalorder %s134, %s137
      %p146 = scmp.eq.s32.totalorder %s19, 1
      %p147 = por %p145, %p146
      %p148 = scmp.ne.s32.totalorder %s137, %s138
      %p149 = scmp.eq.s32.totalorder %s19, 0
      %p150 = por %p148, %p149
      %p151 = scmp.ne.s32.totalorder %s137, %s138
      %p152 = scmp.eq.s32.totalorder %s20, 1
      %p153 = por %p151, %p152
      %p155 = scmp.ne.s32.totalorder %s138, %s154
      %p156 = scmp.eq.s32.totalorder %s20, 0
      %p157 = por %p155, %p156
      %p158 = scmp.le.s32.totalorder 1, %s14
      %p159 = scmp.lt.s32.totalorder %s14, 3
      %p160 = pnand %p158, %p159
      %p161 = pneg %p160
      // Predicated region
      $region9: #{tpu_custom_call.1} parent=5 // pred_check
        _
      $region10: #{tpu_custom_call.1} parent=5 // pred_check_branch
        %163 = sbr.rel (%p160) target = $region12
      $region11: #{tpu_custom_call.1} parent=5 // pred_region
        %s164 = ssub.s32 %s14, 1
        // Predicated region
        $region13: #{tpu_custom_call.1} parent=11 // pred_check
          %p165 = pneg %p61
        $region14: #{tpu_custom_call.1} parent=11 // pred_check_branch
          %167 = sbr.rel (%p165) target = $region16
        $region15: #{tpu_custom_call.1} parent=11 // pred_region
          _
        $region16: #{tpu_custom_call.1} parent=11 // pred_fallthru
          _
        // Predicated region
        $region17: #{tpu_custom_call.1} parent=11 // pred_check
          %p168 = pneg %p82
        $region18: #{tpu_custom_call.1} parent=11 // pred_check_branch
          %170 = sbr.rel (%p168) target = $region20
        $region19: #{tpu_custom_call.1} parent=11 // pred_region
          _
        $region20: #{tpu_custom_call.1} parent=11 // pred_fallthru
          _
        // Predicated region
        $region21: #{tpu_custom_call.1} parent=11 // pred_check
          %p171 = pneg %p103
        $region22: #{tpu_custom_call.1} parent=11 // pred_check_branch
          %173 = sbr.rel (%p171) target = $region24
        $region23: #{tpu_custom_call.1} parent=11 // pred_region
          _
        $region24: #{tpu_custom_call.1} parent=11 // pred_fallthru
          _
        // Predicated region
        $region25: #{tpu_custom_call.1} parent=11 // pred_check
          %p174 = pneg %p124
        $region26: #{tpu_custom_call.1} parent=11 // pred_check_branch
          %176 = sbr.rel (%p174) target = $region28
        $region27: #{tpu_custom_call.1} parent=11 // pred_region
          _
        $region28: #{tpu_custom_call.1} parent=11 // pred_fallthru
          _
      $region12: #{tpu_custom_call.1} parent=5 // pred_fallthru
        _
      %p177 = scmp.lt.s32.totalorder %s14, 2
      // Predicated region
      $region29: #{tpu_custom_call.1} parent=5 // pred_check
        %p178 = pneg %p177
      $region30: #{tpu_custom_call.1} parent=5 // pred_check_branch
        %180 = sbr.rel (%p178) target = $region32
      $region31: #{tpu_custom_call.1} parent=5 // pred_region
        // Predicated region
        $region33: #{tpu_custom_call.1} parent=31 // pred_check
          %p181 = pneg %p34
        $region34: #{tpu_custom_call.1} parent=31 // pred_check_branch
          %183 = sbr.rel (%p181) target = $region36
        $region35: #{tpu_custom_call.1} parent=31 // pred_region
          %s184 = smul.u32 2, %s14
          %p185 = scmp.lt.s32.totalorder %s184, 3
          %s186 = scalar_select %p185, %s184, 3
          %s187 = smul.addr %s186, 4
          %s188 = scalar_lea.vmem %s0, %s187
          %s189 = smul.u32 2, %s14
        $region36: #{tpu_custom_call.1} parent=31 // pred_fallthru
          _
      $region32: #{tpu_custom_call.1} parent=5 // pred_fallthru
        _
      %p190 = scmp.le.s32.totalorder 1, %s14
      %p191 = scmp.lt.s32.totalorder %s14, 3
      %p192 = pnand %p190, %p191
      %p193 = pneg %p192
      // Predicated region
      $region37: #{tpu_custom_call.1} parent=5 // pred_check
        _
      $region38: #{tpu_custom_call.1} parent=5 // pred_check_branch
        %195 = sbr.rel (%p192) target = $region40
      $region39: #{tpu_custom_call.1} parent=5 // pred_region
        %s196 = ssub.s32 %s14, 1
        %s197 = smul.u32 2, %s19
        %p198 = scmp.lt.s32.totalorder %s197, 3
        %s199 = scalar_select %p198, %s197, 3
        %s200 = smul.addr %s199, 4
        %s201 = scalar_lea.vmem %s0, %s200
        %p202 = pneg %p40
        %p203 = pneg %p37
        %p204 = pneg %p61
        %p205 = pneg %p58
        %p206 = pneg %p82
        %p207 = pneg %p79
        %p208 = pneg %p103
        %p209 = pneg %p100
        %p210 = pneg %p124
        %p211 = pneg %p121
        %p212 = pneg %p150
        %p213 = pneg %p147
        %s214 = sand.u32 %s137, 1
        %s215 = scalar_lea.sflag [#allocation3], %s214
        %s216 = sand.u32 %s137, 1
        %s217 = smul.addr %s216, 16
        %s218 = scalar_lea.vmem [#allocation2], %s217
        %s219 = smul.u32 2, %s19
        %p220 = scmp.lt.s32.totalorder %s219, 3
        %s221 = scalar_select %p220, %s219, 3
        %s222 = smul.addr %s221, 4
        %s223 = scalar_lea.vmem %s0, %s222
        %s224 = smul.u32 2, %s19
        %s225 = smul.u32 2, %s19
        %v227 = vld [vmem:[%s223] sm:$0xf]
        %v228 = vld [vmem:[%s223 + $0x4] sm:$0xf]
        %v229 = vld [vmem:[%s1] sm:$0x7]
        %v230 = vld [vmem:[%s2] sm:$0x1]
        %v232 = vlaneseq
        %v233 = vshrl.u32 %v232, 7
        %v234 = vsub.s32 0, %v233
        %v235 = vrot.slane %v230, %v234
        %v239 = vunpack.c.l.b16 %v227
        %v240 = vunpack.c.l.b16 %v228
        %v241 = vpack.c.b16 %v240, %v239
        %vm242 = vcmask 48128
        %v244 = vsel %vm242, %v241, 0
        %vm246 = vcmask 1042432
        %v248 = vsel %vm246, %v229, 0
        %250 = vmatprep.subr.bf16.mxu0 0
        %251 = vmatpush1.bf16.msra.mxu0 %v248
        %252 = vmatprep.subr.bf16.mxu0 0
        %253 = vmatpush1.bf16.msra.mxu0 0
        %254 = vmatprep.subr.bf16.mxu0 0
        %255 = vmatpush1.bf16.msra.mxu0 0
        %256 = vmatprep.subr.bf16.mxu0 0
        %257 = vmatpush1.bf16.msra.mxu0 0
        %258 = vmatprep.subr.bf16.mxu0 0
        %259 = vmatpush1.bf16.msra.mxu0 0
        %260 = vmatprep.subr.bf16.mxu0 0
        %261 = vmatpush1.bf16.msra.mxu0 0
        %262 = vmatprep.subr.bf16.mxu0 0
        %263 = vmatpush1.bf16.msra.mxu0 0
        %264 = vmatprep.subr.bf16.mxu0 0
        %265 = vmatpush1.bf16.msra.mxu0 0
        %266 = vmatprep.subr.bf16.mxu0 0
        %267 = vmatpush1.bf16.msra.mxu0 0
        %268 = vmatprep.subr.bf16.mxu0 0
        %269 = vmatpush1.bf16.msra.mxu0 0
        %270 = vmatprep.subr.bf16.mxu0 0
        %271 = vmatpush1.bf16.msra.mxu0 0
        %272 = vmatprep.subr.bf16.mxu0 0
        %273 = vmatpush1.bf16.msra.mxu0 0
        %274 = vmatprep.subr.bf16.mxu0 0
        %275 = vmatpush1.bf16.msra.mxu0 0
        %276 = vmatprep.subr.bf16.mxu0 0
        %277 = vmatpush1.bf16.msra.mxu0 0
        %278 = vmatprep.subr.bf16.mxu0 0
        %279 = vmatpush1.bf16.msra.mxu0 0
        %280 = vmatprep.subr.bf16.mxu0 0
        %281 = vmatpush1.bf16.msra.mxu0 0
        %282 = vmatprep.mubr.bf16.mxu0 0
        %283 = vmatmul.mubr.bf16.gmra.mrb[0].mxu0 %v244
        %v284 = vpop.f32.mrb[0].mxu0
        %v285 = vadd.f32 %v235, %v284
        %v286 = vpop.f32.mrb[0].mxu0
        %v287 = vpop.f32.mrb[0].mxu0
        %v288 = vadd.f32 %v235, %v287
        %v289 = vpop.f32.mrb[0].mxu0
        %290 = vdwg.mxu0
        %v291 = vmax.f32 %v285, 0.0
        %v292 = vmax.f32 %v288, 0.0
        %v293 = vpack.c.bf16 %v292, %v291
        %v294 = vld [vmem:[%s3] sm:$0xf]
        %v295 = vld [vmem:[%s3 + $0x4] sm:$0xf]
        %v296 = vld [vmem:[%s3 + $0x8] sm:$0xf]
        %v297 = vld [vmem:[%s3 + $0xc] sm:$0xf]
        %v298 = vld [vmem:[%s4] sm:$0x1]
        %v300 = vlaneseq
        %v301 = vshrl.u32 %v300, 7
        %v302 = vsub.s32 0, %v301
        %v303 = vrot.slane %v298, %v302
        %v309 = vunpack.c.l.b16 %v294
        %v310 = vunpack.c.l.b16 %v295
        %v311 = vunpack.c.l.b16 %v296
        %v312 = vunpack.c.l.b16 %v297
        %v313 = vpack.c.b16 %v310, %v309
        %v314 = vpack.c.b16 %v312, %v311
        %vm317 = vcmask 261120
        %v319 = vsel %vm317, %v293, 0
        %321 = vmatprep.subr.bf16.mxu0 0
        %322 = vmatpush1.bf16.msra.mxu0 %v313
        %323 = vmatprep.subr.bf16.mxu0 0
        %324 = vmatpush1.bf16.msra.mxu0 %v314
        %325 = vmatprep.subr.bf16.mxu0 0
        %326 = vmatpush1.bf16.msra.mxu0 0
        %327 = vmatprep.subr.bf16.mxu0 0
        %328 = vmatpush1.bf16.msra.mxu0 0
        %329 = vmatprep.subr.bf16.mxu0 0
        %330 = vmatpush1.bf16.msra.mxu0 0
        %331 = vmatprep.subr.bf16.mxu0 0
        %332 = vmatpush1.bf16.msra.mxu0 0
        %333 = vmatprep.subr.bf16.mxu0 0
        %334 = vmatpush1.bf16.msra.mxu0 0
        %335 = vmatprep.subr.bf16.mxu0 0
        %336 = vmatpush1.bf16.msra.mxu0 0
        %337 = vmatprep.subr.bf16.mxu0 0
        %338 = vmatpush1.bf16.msra.mxu0 0
        %339 = vmatprep.subr.bf16.mxu0 0
        %340 = vmatpush1.bf16.msra.mxu0 0
        %341 = vmatprep.subr.bf16.mxu0 0
        %342 = vmatpush1.bf16.msra.mxu0 0
        %343 = vmatprep.subr.bf16.mxu0 0
        %344 = vmatpush1.bf16.msra.mxu0 0
        %345 = vmatprep.subr.bf16.mxu0 0
        %346 = vmatpush1.bf16.msra.mxu0 0
        %347 = vmatprep.subr.bf16.mxu0 0
        %348 = vmatpush1.bf16.msra.mxu0 0
        %349 = vmatprep.subr.bf16.mxu0 0
        %350 = vmatpush1.bf16.msra.mxu0 0
        %351 = vmatprep.subr.bf16.mxu0 0
        %352 = vmatpush1.bf16.msra.mxu0 0
        %353 = vmatprep.mubr.bf16.mxu0 0
        %354 = vmatmul.mubr.bf16.gmra.mrb[0].mxu0 %v319
        %v355 = vpop.f32.mrb[0].mxu0
        %v356 = vadd.f32 %v303, %v355
        %v357 = vpop.f32.mrb[0].mxu0
        %v358 = vpop.f32.mrb[0].mxu0
        %v359 = vadd.f32 %v303, %v358
        %v360 = vpop.f32.mrb[0].mxu0
        %361 = vdwg.mxu0
        %362 = vst.msk [vmem:[%s218] sm:$0xff] %vm317, %v356
        %363 = vst.msk [vmem:[%s218 + $0x8] sm:$0xff] %vm317, %v359
        %s364 = sand.u32 %s137, 1
        %s365 = scalar_lea.sflag [#allocation3], %s364
        %s366 = sand.u32 %s137, 1
        %s367 = smul.addr %s366, 16
        %s368 = scalar_lea.vmem [#allocation2], %s367
        // Predicated region
        $region41: #{tpu_custom_call.1} parent=39 // pred_check
          %p369 = pneg %p147
        $region42: #{tpu_custom_call.1} parent=39 // pred_check_branch
          %371 = sbr.rel (%p369) target = $region44
        $region43: #{tpu_custom_call.1} parent=39 // pred_region
          %s372 = smul.u32 2, %s19
          %s374 = ssub.s32 256, 256
          %375 = vsyncadd %s365, %s374
          %s376 = smul.addr %s372, 128
          %s377 = scalar_lea.hbm %s5, %s376
          %s378 = sshll.u32 %s368, 4
          %s379 = int_to_ptr.vmem [resolvable:$true] %s378
          %384 = dma.vmem_to_hbm [thread:$0]  %s379, 256, %s377, %s365, 128, 128, 8
        $region44: #{tpu_custom_call.1} parent=39 // pred_fallthru
          _
      $region40: #{tpu_custom_call.1} parent=5 // pred_fallthru
        _
      %p385 = scmp.le.s32.totalorder 2, %s14
      // Predicated region
      $region45: #{tpu_custom_call.1} parent=5 // pred_check
        %p386 = pneg %p385
      $region46: #{tpu_custom_call.1} parent=5 // pred_check_branch
        %388 = sbr.rel (%p386) target = $region48
      $region47: #{tpu_custom_call.1} parent=5 // pred_region
        %s389 = ssub.s32 %s14, 2
        // Predicated region
        $region49: #{tpu_custom_call.1} parent=47 // pred_check
          %p390 = pneg %p153
        $region50: #{tpu_custom_call.1} parent=47 // pred_check_branch
          %392 = sbr.rel (%p390) target = $region52
        $region51: #{tpu_custom_call.1} parent=47 // pred_region
          %s393 = sand.u32 %s138, 1
          %s394 = scalar_lea.sflag [#allocation3], %s393
          %s395 = sand.u32 %s138, 1
          %s396 = smul.addr %s395, 16
          %s397 = scalar_lea.vmem [#allocation2], %s396
          %398 = dma.done %s394, 256
        $region52: #{tpu_custom_call.1} parent=47 // pred_fallthru
          _
      $region48: #{tpu_custom_call.1} parent=5 // pred_fallthru
        _
    $region6: #{tpu_custom_call.1} parent=1 // loop_footer
      %s18 = sadd.s32 1, %s14
    $region7: #{tpu_custom_call.1} parent=1 // loop_footer_branch
      %13 = sbr.rel target = $region3
    $region8: #{tpu_custom_call.1} parent=1 // loop_exit
      _
    %399 = vsyncpa [#allocation3], 1
    %s400 = scalar_lea.sflag [#allocation3], 1
    %401 = vsyncpa %s400, 1

</llo_original>
